<compile_context>
chip_gen: v6e
topology: v6e:2x2x1
jax: 0.10.0
libtpu: 0.0.40
codegen_flags: <defaults>
</compile_context>

<pallas_src>
import functools

import jax
import jax.numpy as jnp
from jax.experimental import pallas as pl
from jax.experimental.pallas import tpu as pltpu


# ----------------------------- helpers ---------------------------------------

def _round_up(v, m):
    return ((v + m - 1) // m) * m


def _device_kind():
    try:
        return jax.devices()[0].device_kind.lower()
    except Exception:
        return ""


def _is_v7x():
    kind = _device_kind()
    return ("v7" in kind) or ("7x" in kind)


def _default_fold_width():
    # v7x: 2x256^2 MXU + 3.2 TB/s HBM -> closest to MXU-bound, match the 256 width.
    # v5e: 128 exactly matches its 128x128 MXUs.  v6e: stays HBM-bound at 128.
    return 256 if _is_v7x() else 128


def _default_parallel_steps():
    # Only v7x has 2 TensorCores per chip.  On v5e/v6e the grid is a purely
    # sequential loop, so forcing extra steps is pure ~0.35 us/step overhead.
    return 2 if _is_v7x() else 1


def _fold_factor(out_dim, fold_width):
    # Pack f batch rows into one lane-dense row so f*out_dim is a multiple of 128
    # (fully occupied vregs, unmasked full-lane output stores).  The fold is a pure
    # row-major reshape of x / out, so memory layout is unchanged.
    for width in (fold_width, 128):
        if out_dim <= width and width % out_dim == 0:
            return width // out_dim
    # out_dim does not divide 128: still correct, but the lane-dense / unmasked
    # store benefits silently disappear (f = 1 fallback).
    return 1


def _const_spec(shape):
    """Spec for weights/biases whose block index never changes (VMEM-resident).

    Requests single buffering when the installed Pallas supports pipeline_mode --
    the second pipeline buffer of a constant-index block is dead VMEM.
    """
    index_map = lambda i: (0, 0)
    if hasattr(pl, "Buffered"):
        try:
            return pl.BlockSpec(shape, index_map, pipeline_mode=pl.Buffered(1))
        except TypeError:
            pass
    return pl.BlockSpec(shape, index_map)


# ------------------------------ kernel ----------------------------------------

def _np_decoder_kernel(x_ref, w1_ref, b1_ref, w2_ref, b2_ref, w3_ref, b3_ref, o_ref):
    # x_ref : (tmf, f*in_dim)   lane-dense tile of folded inputs
    # wN_ref: block-diagonal weights (sigmoid affine constants pre-folded)
    # bN_ref: (1, f*out_dim)    f-tiled biases, f32
    # o_ref : (tmf, f*out_dim)  lane-dense output slab (unmasked full-lane stores)
    cdt = w1_ref.dtype  # MXU compute dtype (f32 default, optional bf16)
    x = x_ref[...].astype(cdt)
    h = jnp.dot(x, w1_ref[...], preferred_element_type=jnp.float32) + b1_ref[...]
    h = jnp.tanh(h)  # equals sigmoid up to the affine folded into the weights
    h = jnp.dot(h.astype(cdt), w2_ref[...], preferred_element_type=jnp.float32) + b2_ref[...]
    h = jnp.tanh(h)
    h = jnp.dot(h.astype(cdt), w3_ref[...], preferred_element_type=jnp.float32) + b3_ref[...]
    o_ref[...] = h.astype(o_ref.dtype)


# --------------------------- weight preparation --------------------------------

def prepare_np_decoder_params(params, *, fold_width=None, compute_dtype=jnp.float32):
    """One-time (per set of weights) preparation, hoisted out of the forward path.

    - Folds sigmoid(h) = 0.5*(tanh(0.5*h)+1) affine constants into weights/biases
      so the kernel is dot->tanh->dot->tanh->dot with no extra VALU work:
          W1' = 0.5*W1      b1' = 0.5*b1
          W2' = 0.25*W2     b2' = 0.5*b2 + 0.25*colsum(W2)
          W3' = 0.5*W3      b3' = b3 + 0.5*colsum(W3)
    - Builds the lane-folding block-diagonal weights and f-tiled biases.
    - Optionally stores the weights in bf16 (compute_dtype) for the matmuls
      (v5e large-N option); biases stay f32.

    params: dict with w1,b1,w2,b2,w3,b3; weights stored (fan_in, fan_out).
    NOTE: real PyTorch nn.Linear weights are (out, in) -- transpose before use.
    """
    w1 = jnp.asarray(params["w1"], jnp.float32)
    b1 = jnp.asarray(params["b1"], jnp.float32)
    w2 = jnp.asarray(params["w2"], jnp.float32)
    b2 = jnp.asarray(params["b2"], jnp.float32)
    w3 = jnp.asarray(params["w3"], jnp.float32)
    b3 = jnp.asarray(params["b3"], jnp.float32)

    _, out_dim = w1.shape
    if fold_width is None:
        fold_width = _default_fold_width()
    f = _fold_factor(out_dim, fold_width)

    # Fold the sigmoid affine constants (exact algebra, done once on tiny weights).
    w1f, b1f = 0.5 * w1, 0.5 * b1
    w2f, b2f = 0.25 * w2, 0.5 * b2 + 0.25 * jnp.sum(w2, axis=0)
    w3f, b3f = 0.5 * w3, b3 + 0.5 * jnp.sum(w3, axis=0)

    def blockdiag(w):
        return w if f == 1 else jax.scipy.linalg.block_diag(*([w] * f))

    def tile_bias(b):
        return jnp.tile(b, f).reshape(1, f * b.shape[0])

    return {
        "w1": blockdiag(w1f).astype(compute_dtype),
        "b1": tile_bias(b1f),
        "w2": blockdiag(w2f).astype(compute_dtype),
        "b2": tile_bias(b2f),
        "w3": blockdiag(w3f).astype(compute_dtype),
        "b3": tile_bias(b3f),
    }


# ------------------------------- forward ---------------------------------------

@functools.partial(jax.jit, static_argnames=("block_rows", "num_parallel_steps"))
def np_decoder_forward(x, prepared, *, block_rows=8192, num_parallel_steps=None):
    """x: (N, in_dim) float32.  prepared: output of prepare_np_decoder_params().

    block_rows ~ ORIGINAL batch rows per grid step (~1-2 MiB x/out tiles by default).
    num_parallel_steps: minimum grid steps (2 on v7x so both TCs get work; 1 else).
    """
    if num_parallel_steps is None:
        num_parallel_steps = _default_parallel_steps()

    N, in_dim = x.shape
    in_f, out_f = prepared["w1"].shape          # f*in_dim, f*out_dim
    f = in_f // in_dim
    out_dim = out_f // f

    # ---- fold f rows into one lane-dense row (row-major reshape: same bytes) ----
    # Pad only when N is not a multiple of f (adds < f rows).  The grid tail is
    # handled by Pallas partial-last-block masking, so there is no pad-to-tile or
    # out[:N_pad] full-array HBM pass.
    Nf = -(-N // f)
    n_fold = Nf * f
    x_p = jnp.pad(x, ((0, n_fold - N), (0, 0))) if n_fold != N else x
    x_f = x_p.reshape(Nf, in_f)

    # ---- tile selection: one big step per TensorCore ----
    tmf_cap = max(8, _round_up(max(block_rows // f, 1), 8))   # folded rows / step
    steps = max(1, int(num_parallel_steps))
    tmf = min(tmf_cap, max(8, _round_up(-(-Nf // steps), 8)))
    grid = (pl.cdiv(Nf, tmf),)

    # VMEM budget: double-buffered x/out tiles + weights/biases (conservative 2x).
    est = (2 * tmf * (in_f + out_f) * x.dtype.itemsize
           + 2 * sum(int(v.size) * v.dtype.itemsize for v in prepared.values()))
    cp_kwargs = dict(dimension_semantics=("parallel",))
    if est > (12 << 20):   # only override when we'd outgrow v5e's 16 MiB default
        cp_kwargs["vmem_limit_bytes"] = min(est + (8 << 20), 128 << 20)

    out_folded = pl.pallas_call(
        _np_decoder_kernel,
        out_shape=jax.ShapeDtypeStruct((Nf, out_f), x.dtype),
        grid_spec=pltpu.PrefetchScalarGridSpec(
            num_scalar_prefetch=0,
            grid=grid,
            in_specs=[
                pl.BlockSpec((tmf, in_f), lambda i: (i, 0)),   # x tile (lane-dense)
                _const_spec((in_f, out_f)),                    # w1 (block-diag)
                _const_spec((1, out_f)),                       # b1
                _const_spec((out_f, out_f)),                   # w2
                _const_spec((1, out_f)),                       # b2
                _const_spec((out_f, out_f)),                   # w3
                _const_spec((1, out_f)),                       # b3
            ],
            out_specs=pl.BlockSpec((tmf, out_f), lambda i: (i, 0)),
        ),
        compiler_params=pltpu.CompilerParams(**cp_kwargs),
    )(x_f, prepared["w1"], prepared["b1"], prepared["w2"], prepared["b2"],
      prepared["w3"], prepared["b3"])

    out = out_folded.reshape(n_fold, out_dim)   # un-fold: same bytes
    return out[:N] if n_fold != N else out


# -------------------------- init & pure-JAX reference ---------------------------

def init_np_decoder_params(key, in_dim, out_dim):
    """Deterministic init mimicking nn.Linear's U(-1/sqrt(fan_in), 1/sqrt(fan_in)).
    Weights are stored transposed: (fan_in, fan_out)."""
    ks = jax.random.split(key, 6)

    def lin(kw, kb, fan_in, fan_out):
        bound = 1.0 / jnp.sqrt(fan_in)
        w = jax.random.uniform(kw, (fan_in, fan_out), jnp.float32, -bound, bound)
        b = jax.random.uniform(kb, (fan_out,), jnp.float32, -bound, bound)
        return w, b

    w1, b1 = lin(ks[0], ks[1], in_dim, out_dim)
    w2, b2 = lin(ks[2], ks[3], out_dim, out_dim)
    w3, b3 = lin(ks[4], ks[5], out_dim, out_dim)
    return {"w1": w1, "b1": b1, "w2": w2, "b2": b2, "w3": w3, "b3": b3}


def np_decoder_ref(x, params):
    """Pure-JAX reference (matches the PyTorch forward)."""
    h = jax.nn.sigmoid(x @ params["w1"] + params["b1"])
    h = jax.nn.sigmoid(h @ params["w2"] + params["b2"])
    return h @ params["w3"] + params["b3"]


if __name__ == "__main__":
    key = jax.random.PRNGKey(0)
    k_x, k_p = jax.random.split(key)

    # Shapes consistent with the module: rnn_dec_in_dim = rnn_dec_out_dim = 32,
    # batch of 256 "r representations" (exercises lane folding; fits one grid step
    # per TensorCore).
    N, in_dim, out_dim = 256, 32, 32

    x = jax.random.normal(k_x, (N, in_dim), jnp.float32)
    params = init_np_decoder_params(k_p, in_dim, out_dim)

    prepared = prepare_np_decoder_params(params)   # one-time weight preparation
    out = np_decoder_forward(x, prepared)
    out = jax.block_until_ready(out)

    ref = np_decoder_ref(x, params)
    assert out.shape == (N, out_dim)
    assert jnp.allclose(out, ref, atol=1e-4, rtol=1e-4), "mismatch vs reference"

    print("KERNEL_OK")
</pallas_src>

<mosaic_0001>
module attributes {stable_mosaic.version = 11 : i64} {
  func.func @_np_decoder_kernel(%arg0: i32, %arg1: memref<64x128xf32, #tpu.memory_space<vmem>>, %arg2: memref<128x128xf32, #tpu.memory_space<vmem>>, %arg3: memref<1x128xf32, #tpu.memory_space<vmem>>, %arg4: memref<128x128xf32, #tpu.memory_space<vmem>>, %arg5: memref<1x128xf32, #tpu.memory_space<vmem>>, %arg6: memref<128x128xf32, #tpu.memory_space<vmem>>, %arg7: memref<1x128xf32, #tpu.memory_space<vmem>>, %arg8: memref<64x128xf32, #tpu.memory_space<vmem>>) attributes {dimension_semantics = [#tpu.dimension_semantics<parallel>], iteration_bounds = array<i64: 1>, scalar_prefetch = 0 : i64, scratch_operands = 0 : i64, tpu.core_type = #tpu.core_type<tc>, window_params = [{transform_indices = @transform_0, window_bounds = array<i64: 64, 128>}, {pipeline_mode = #tpu.pipeline_mode<synchronous>, transform_indices = @transform_1, window_bounds = array<i64: 128, 128>}, {pipeline_mode = #tpu.pipeline_mode<synchronous>, transform_indices = @transform_2, window_bounds = array<i64: 1, 128>}, {pipeline_mode = #tpu.pipeline_mode<synchronous>, transform_indices = @transform_3, window_bounds = array<i64: 128, 128>}, {pipeline_mode = #tpu.pipeline_mode<synchronous>, transform_indices = @transform_4, window_bounds = array<i64: 1, 128>}, {pipeline_mode = #tpu.pipeline_mode<synchronous>, transform_indices = @transform_5, window_bounds = array<i64: 128, 128>}, {pipeline_mode = #tpu.pipeline_mode<synchronous>, transform_indices = @transform_6, window_bounds = array<i64: 1, 128>}, {transform_indices = @transform_7, window_bounds = array<i64: 64, 128>}]} {
    %c0 = arith.constant 0 : index
    %c0_0 = arith.constant 0 : index
    %0 = vector.load %arg1[%c0, %c0_0] : memref<64x128xf32, #tpu.memory_space<vmem>>, vector<64x128xf32>
    %c0_1 = arith.constant 0 : index
    %c0_2 = arith.constant 0 : index
    %1 = vector.load %arg2[%c0_1, %c0_2] : memref<128x128xf32, #tpu.memory_space<vmem>>, vector<128x128xf32>
    %cst = arith.constant dense<0.000000e+00> : vector<64x128xf32>
    %2 = tpu.matmul %0, %1, %cst {dimension_numbers = #tpu.dot_dimension_numbers<[1], [0], [0], [1], [0, 0, 1, 1], [], []>} : vector<64x128xf32>, vector<128x128xf32>, vector<64x128xf32> -> vector<64x128xf32>
    %c0_3 = arith.constant 0 : index
    %c0_4 = arith.constant 0 : index
    %3 = vector.load %arg3[%c0_3, %c0_4] : memref<1x128xf32, #tpu.memory_space<vmem>>, vector<1x128xf32>
    %4 = vector.broadcast %3 : vector<1x128xf32> to vector<64x128xf32>
    %5 = arith.addf %2, %4 : vector<64x128xf32>
    %6 = math.tanh %5 : vector<64x128xf32>
    %c0_5 = arith.constant 0 : index
    %c0_6 = arith.constant 0 : index
    %7 = vector.load %arg4[%c0_5, %c0_6] : memref<128x128xf32, #tpu.memory_space<vmem>>, vector<128x128xf32>
    %cst_7 = arith.constant dense<0.000000e+00> : vector<64x128xf32>
    %8 = tpu.matmul %6, %7, %cst_7 {dimension_numbers = #tpu.dot_dimension_numbers<[1], [0], [0], [1], [0, 0, 1, 1], [], []>} : vector<64x128xf32>, vector<128x128xf32>, vector<64x128xf32> -> vector<64x128xf32>
    %c0_8 = arith.constant 0 : index
    %c0_9 = arith.constant 0 : index
    %9 = vector.load %arg5[%c0_8, %c0_9] : memref<1x128xf32, #tpu.memory_space<vmem>>, vector<1x128xf32>
    %10 = vector.broadcast %9 : vector<1x128xf32> to vector<64x128xf32>
    %11 = arith.addf %8, %10 : vector<64x128xf32>
    %12 = math.tanh %11 : vector<64x128xf32>
    %c0_10 = arith.constant 0 : index
    %c0_11 = arith.constant 0 : index
    %13 = vector.load %arg6[%c0_10, %c0_11] : memref<128x128xf32, #tpu.memory_space<vmem>>, vector<128x128xf32>
    %cst_12 = arith.constant dense<0.000000e+00> : vector<64x128xf32>
    %14 = tpu.matmul %12, %13, %cst_12 {dimension_numbers = #tpu.dot_dimension_numbers<[1], [0], [0], [1], [0, 0, 1, 1], [], []>} : vector<64x128xf32>, vector<128x128xf32>, vector<64x128xf32> -> vector<64x128xf32>
    %c0_13 = arith.constant 0 : index
    %c0_14 = arith.constant 0 : index
    %15 = vector.load %arg7[%c0_13, %c0_14] : memref<1x128xf32, #tpu.memory_space<vmem>>, vector<1x128xf32>
    %16 = vector.broadcast %15 : vector<1x128xf32> to vector<64x128xf32>
    %17 = arith.addf %14, %16 : vector<64x128xf32>
    %c0_15 = arith.constant 0 : index
    %c0_16 = arith.constant 0 : index
    %18 = vector.load %arg8[%c0_15, %c0_16] : memref<64x128xf32, #tpu.memory_space<vmem>>, vector<64x128xf32>
    tpu.vector_store %arg8[%c0_15, %c0_16], %17 {strides = array<i32>} : memref<64x128xf32, #tpu.memory_space<vmem>>, vector<64x128xf32>,
    return
  }
  func.func @transform_0(%arg0: i32) -> (i32, i32) {
    %c0_i32 = arith.constant 0 : i32
    %c0_i32_0 = arith.constant 0 : i32
    return %arg0, %c0_i32 : i32, i32
  }
  func.func @transform_1(%arg0: i32) -> (i32, i32) {
    %c0_i32 = arith.constant 0 : i32
    %c0_i32_0 = arith.constant 0 : i32
    %c0_i32_1 = arith.constant 0 : i32
    return %c0_i32, %c0_i32_0 : i32, i32
  }
  func.func @transform_2(%arg0: i32) -> (i32, i32) {
    %c0_i32 = arith.constant 0 : i32
    %c0_i32_0 = arith.constant 0 : i32
    %c0_i32_1 = arith.constant 0 : i32
    return %c0_i32, %c0_i32_0 : i32, i32
  }
  func.func @transform_3(%arg0: i32) -> (i32, i32) {
    %c0_i32 = arith.constant 0 : i32
    %c0_i32_0 = arith.constant 0 : i32
    %c0_i32_1 = arith.constant 0 : i32
    return %c0_i32, %c0_i32_0 : i32, i32
  }
  func.func @transform_4(%arg0: i32) -> (i32, i32) {
    %c0_i32 = arith.constant 0 : i32
    %c0_i32_0 = arith.constant 0 : i32
    %c0_i32_1 = arith.constant 0 : i32
    return %c0_i32, %c0_i32_0 : i32, i32
  }
  func.func @transform_5(%arg0: i32) -> (i32, i32) {
    %c0_i32 = arith.constant 0 : i32
    %c0_i32_0 = arith.constant 0 : i32
    %c0_i32_1 = arith.constant 0 : i32
    return %c0_i32, %c0_i32_0 : i32, i32
  }
  func.func @transform_6(%arg0: i32) -> (i32, i32) {
    %c0_i32 = arith.constant 0 : i32
    %c0_i32_0 = arith.constant 0 : i32
    %c0_i32_1 = arith.constant 0 : i32
    return %c0_i32, %c0_i32_0 : i32, i32
  }
  func.func @transform_7(%arg0: i32) -> (i32, i32) {
    %c0_i32 = arith.constant 0 : i32
    %c0_i32_0 = arith.constant 0 : i32
    return %arg0, %c0_i32 : i32, i32
  }
}

</mosaic_0001>

<llo_original>
// kernel: np_decoder_forward.1
$region0: #{np_decoder_forward.1}
  #allocation0 [shape = 'u32[]', space=smem, size = 0x4, offset = 0x4, fixed_abs, tag = 'smem constant byte address 0x4 - core index']
  #allocation1 [shape = 'u32[144,128]{1,0:T(1,128)}', space=vmem, size = 0x12000, scoped, tag = 'internal scratch']
  %s0 = inlined_call_operand.vmem [shape: f32[64,128], index: 0, kind: input, shape index: {}]
  %s1 = inlined_call_operand.vmem [shape: f32[128,128], index: 1, kind: input, shape index: {}]
  %s2 = inlined_call_operand.vmem [shape: f32[1,128], index: 2, kind: input, shape index: {}]
  %s3 = inlined_call_operand.vmem [shape: f32[128,128], index: 3, kind: input, shape index: {}]
  %s4 = inlined_call_operand.vmem [shape: f32[1,128], index: 4, kind: input, shape index: {}]
  %s5 = inlined_call_operand.vmem [shape: f32[128,128], index: 5, kind: input, shape index: {}]
  %s6 = inlined_call_operand.vmem [shape: f32[1,128], index: 6, kind: input, shape index: {}]
  %s7 = inlined_call_operand.vmem [shape: f32[64,128], index: 7, kind: output, shape index: {}]
  %s8 = sld [smem:[#allocation0]]
  $region38: #{np_decoder_forward.1} parent=0
    _
  %s10 = ssub.s32 1, %s8
  %s11 = scalar_select 0, %s10, %s8
  // Predicated region
  $region2: #{np_decoder_forward.1} parent=0 // pred_check
    _
  $region3: #{np_decoder_forward.1} parent=0 // pred_check_branch
    %13 = sbr.rel (0) target = $region5
  $region4: #{np_decoder_forward.1} parent=0 // pred_region
    _
  $region5: #{np_decoder_forward.1} parent=0 // pred_fallthru
    _
  // Predicated region
  $region6: #{np_decoder_forward.1} parent=0 // pred_check
    _
  $region7: #{np_decoder_forward.1} parent=0 // pred_check_branch
    %15 = sbr.rel (0) target = $region9
  $region8: #{np_decoder_forward.1} parent=0 // pred_region
    _
  $region9: #{np_decoder_forward.1} parent=0 // pred_fallthru
    _
  // Predicated region
  $region10: #{np_decoder_forward.1} parent=0 // pred_check
    _
  $region11: #{np_decoder_forward.1} parent=0 // pred_check_branch
    %17 = sbr.rel (0) target = $region13
  $region12: #{np_decoder_forward.1} parent=0 // pred_region
    _
  $region13: #{np_decoder_forward.1} parent=0 // pred_fallthru
    _
  // Predicated region
  $region14: #{np_decoder_forward.1} parent=0 // pred_check
    _
  $region15: #{np_decoder_forward.1} parent=0 // pred_check_branch
    %19 = sbr.rel (0) target = $region17
  $region16: #{np_decoder_forward.1} parent=0 // pred_region
    _
  $region17: #{np_decoder_forward.1} parent=0 // pred_fallthru
    _
  // Predicated region
  $region18: #{np_decoder_forward.1} parent=0 // pred_check
    _
  $region19: #{np_decoder_forward.1} parent=0 // pred_check_branch
    %21 = sbr.rel (0) target = $region21
  $region20: #{np_decoder_forward.1} parent=0 // pred_region
    _
  $region21: #{np_decoder_forward.1} parent=0 // pred_fallthru
    _
  // Predicated region
  $region22: #{np_decoder_forward.1} parent=0 // pred_check
    _
  $region23: #{np_decoder_forward.1} parent=0 // pred_check_branch
    %23 = sbr.rel (0) target = $region25
  $region24: #{np_decoder_forward.1} parent=0 // pred_region
    _
  $region25: #{np_decoder_forward.1} parent=0 // pred_fallthru
    _
  // Predicated region
  $region26: #{np_decoder_forward.1} parent=0 // pred_check
    _
  $region27: #{np_decoder_forward.1} parent=0 // pred_check_branch
    %25 = sbr.rel (0) target = $region29
  $region28: #{np_decoder_forward.1} parent=0 // pred_region
    _
  $region29: #{np_decoder_forward.1} parent=0 // pred_fallthru
    _
  %v26 = vld [vmem:[%s0] sm:$0xff]
  %v27 = vld [vmem:[%s0 + $0x8] sm:$0xff]
  %v28 = vld [vmem:[%s0 + $0x10] sm:$0xff]
  %v29 = vld [vmem:[%s0 + $0x18] sm:$0xff]
  %v30 = vld [vmem:[%s0 + $0x20] sm:$0xff]
  %v31 = vld [vmem:[%s0 + $0x28] sm:$0xff]
  %v32 = vld [vmem:[%s0 + $0x30] sm:$0xff]
  %v33 = vld [vmem:[%s0 + $0x38] sm:$0xff]
  %v34 = vld [vmem:[%s1] sm:$0xff]
  %v35 = vld [vmem:[%s1 + $0x8] sm:$0xff]
  %v36 = vld [vmem:[%s1 + $0x10] sm:$0xff]
  %v37 = vld [vmem:[%s1 + $0x18] sm:$0xff]
  %v38 = vld [vmem:[%s1 + $0x20] sm:$0xff]
  %v39 = vld [vmem:[%s1 + $0x28] sm:$0xff]
  %v40 = vld [vmem:[%s1 + $0x30] sm:$0xff]
  %v41 = vld [vmem:[%s1 + $0x38] sm:$0xff]
  %v42 = vld [vmem:[%s1 + $0x40] sm:$0xff]
  %v43 = vld [vmem:[%s1 + $0x48] sm:$0xff]
  %v44 = vld [vmem:[%s1 + $0x50] sm:$0xff]
  %v45 = vld [vmem:[%s1 + $0x58] sm:$0xff]
  %v46 = vld [vmem:[%s1 + $0x60] sm:$0xff]
  %v47 = vld [vmem:[%s1 + $0x68] sm:$0xff]
  %v48 = vld [vmem:[%s1 + $0x70] sm:$0xff]
  %v49 = vld [vmem:[%s1 + $0x78] sm:$0xff]
  %v50 = vld [vmem:[%s2] sm:$0x1]
  %v52 = vlaneseq
  %v53 = vshrl.u32 %v52, 7
  %v54 = vsub.s32 0, %v53
  %v55 = vrot.slane %v50, %v54
  %57 = vmatprep.subr.mxu0 0.0
  %58 = vmatpush1.msra.mxu0 %v49
  %59 = vmatprep.subr.mxu0 0.0
  %60 = vmatpush1.msra.mxu0 %v48
  %61 = vmatprep.subr.mxu0 0.0
  %62 = vmatpush1.msra.mxu0 %v47
  %63 = vmatprep.subr.mxu0 0.0
  %64 = vmatpush1.msra.mxu0 %v46
  %65 = vmatprep.subr.mxu0 0.0
  %66 = vmatpush1.msra.mxu0 %v45
  %67 = vmatprep.subr.mxu0 0.0
  %68 = vmatpush1.msra.mxu0 %v44
  %69 = vmatprep.subr.mxu0 0.0
  %70 = vmatpush1.msra.mxu0 %v43
  %71 = vmatprep.subr.mxu0 0.0
  %72 = vmatpush1.msra.mxu0 %v42
  %73 = vmatprep.subr.mxu0 0.0
  %74 = vmatpush1.msra.mxu0 %v41
  %75 = vmatprep.subr.mxu0 0.0
  %76 = vmatpush1.msra.mxu0 %v40
  %77 = vmatprep.subr.mxu0 0.0
  %78 = vmatpush1.msra.mxu0 %v39
  %79 = vmatprep.subr.mxu0 0.0
  %80 = vmatpush1.msra.mxu0 %v38
  %81 = vmatprep.subr.mxu0 0.0
  %82 = vmatpush1.msra.mxu0 %v37
  %83 = vmatprep.subr.mxu0 0.0
  %84 = vmatpush1.msra.mxu0 %v36
  %85 = vmatprep.subr.mxu0 0.0
  %86 = vmatpush1.msra.mxu0 %v35
  %87 = vmatprep.subr.mxu0 0.0
  %88 = vmatpush1.msra.mxu0 %v34
  %89 = vmatprep.subr.mxu0 0.0
  %90 = vmatpush2.msra.mxu0 0.0
  %91 = vmatprep.subr.mxu0 0.0
  %92 = vmatpush2.msra.mxu0 0.0
  %93 = vmatprep.subr.mxu0 0.0
  %94 = vmatpush2.msra.mxu0 0.0
  %95 = vmatprep.subr.mxu0 0.0
  %96 = vmatpush2.msra.mxu0 0.0
  %97 = vmatprep.subr.mxu0 0.0
  %98 = vmatpush2.msra.mxu0 0.0
  %99 = vmatprep.subr.mxu0 0.0
  %100 = vmatpush2.msra.mxu0 0.0
  %101 = vmatprep.subr.mxu0 0.0
  %102 = vmatpush2.msra.mxu0 0.0
  %103 = vmatprep.subr.mxu0 0.0
  %104 = vmatpush2.msra.mxu0 0.0
  %105 = vmatprep.subr.mxu0 0.0
  %106 = vmatpush2.msra.mxu0 0.0
  %107 = vmatprep.subr.mxu0 0.0
  %108 = vmatpush2.msra.mxu0 0.0
  %109 = vmatprep.subr.mxu0 0.0
  %110 = vmatpush2.msra.mxu0 0.0
  %111 = vmatprep.subr.mxu0 0.0
  %112 = vmatpush2.msra.mxu0 0.0
  %113 = vmatprep.subr.mxu0 0.0
  %114 = vmatpush2.msra.mxu0 0.0
  %115 = vmatprep.subr.mxu0 0.0
  %116 = vmatpush2.msra.mxu0 0.0
  %117 = vmatprep.subr.mxu0 0.0
  %118 = vmatpush2.msra.mxu0 0.0
  %119 = vmatprep.subr.mxu0 0.0
  %120 = vmatpush2.msra.mxu0 0.0
  %121 = vmatprep.mubr.f32.mxu0 0.0
  %122 = vmatmul.mubr.f32.gmra.mxu0 %v26
  %v123 = vpop.f32.mrf.mxu0
  %v124 = vadd.f32 %v55, %v123
  %v125 = vpop.f32.mrf.mxu0
  %126 = vmatprep.mubr.f32.mxu0 0.0
  %127 = vmatmul.mubr.f32.gmra.mxu0 %v27
  %v128 = vpop.f32.mrf.mxu0
  %v129 = vadd.f32 %v55, %v128
  %v130 = vpop.f32.mrf.mxu0
  %131 = vmatprep.mubr.f32.mxu0 0.0
  %132 = vmatmul.mubr.f32.gmra.mxu0 %v28
  %v133 = vpop.f32.mrf.mxu0
  %v134 = vadd.f32 %v55, %v133
  %v135 = vpop.f32.mrf.mxu0
  %136 = vmatprep.mubr.f32.mxu0 0.0
  %137 = vmatmul.mubr.f32.gmra.mxu0 %v29
  %v138 = vpop.f32.mrf.mxu0
  %v139 = vadd.f32 %v55, %v138
  %v140 = vpop.f32.mrf.mxu0
  %141 = vmatprep.mubr.f32.mxu0 0.0
  %142 = vmatmul.mubr.f32.gmra.mxu0 %v30
  %v143 = vpop.f32.mrf.mxu0
  %v144 = vadd.f32 %v55, %v143
  %v145 = vpop.f32.mrf.mxu0
  %146 = vmatprep.mubr.f32.mxu0 0.0
  %147 = vmatmul.mubr.f32.gmra.mxu0 %v31
  %v148 = vpop.f32.mrf.mxu0
  %v149 = vadd.f32 %v55, %v148
  %v150 = vpop.f32.mrf.mxu0
  %151 = vmatprep.mubr.f32.mxu0 0.0
  %152 = vmatmul.mubr.f32.gmra.mxu0 %v32
  %v153 = vpop.f32.mrf.mxu0
  %v154 = vadd.f32 %v55, %v153
  %v155 = vpop.f32.mrf.mxu0
  %156 = vmatprep.mubr.f32.mxu0 0.0
  %157 = vmatmul.mubr.f32.gmra.mxu0 %v33
  %v158 = vpop.f32.mrf.mxu0
  %v159 = vadd.f32 %v55, %v158
  %v160 = vpop.f32.mrf.mxu0
  %161 = vdwg.mxu0
  %v162 = vtanh.pop %v124
  %v163 = vtanh.pop %v129
  %v164 = vtanh.pop %v134
  %v165 = vtanh.pop %v139
  %v166 = vtanh.pop %v144
  %v167 = vtanh.pop %v149
  %v168 = vtanh.pop %v154
  %v169 = vtanh.pop %v159
  %v170 = vld [vmem:[%s3] sm:$0xff]
  %v171 = vld [vmem:[%s3 + $0x8] sm:$0xff]
  %v172 = vld [vmem:[%s3 + $0x10] sm:$0xff]
  %v173 = vld [vmem:[%s3 + $0x18] sm:$0xff]
  %v174 = vld [vmem:[%s3 + $0x20] sm:$0xff]
  %v175 = vld [vmem:[%s3 + $0x28] sm:$0xff]
  %v176 = vld [vmem:[%s3 + $0x30] sm:$0xff]
  %v177 = vld [vmem:[%s3 + $0x38] sm:$0xff]
  %v178 = vld [vmem:[%s3 + $0x40] sm:$0xff]
  %v179 = vld [vmem:[%s3 + $0x48] sm:$0xff]
  %v180 = vld [vmem:[%s3 + $0x50] sm:$0xff]
  %v181 = vld [vmem:[%s3 + $0x58] sm:$0xff]
  %v182 = vld [vmem:[%s3 + $0x60] sm:$0xff]
  %v183 = vld [vmem:[%s3 + $0x68] sm:$0xff]
  %v184 = vld [vmem:[%s3 + $0x70] sm:$0xff]
  %v185 = vld [vmem:[%s3 + $0x78] sm:$0xff]
  %v186 = vld [vmem:[%s4] sm:$0x1]
  %v188 = vlaneseq
  %v189 = vshrl.u32 %v188, 7
  %v190 = vsub.s32 0, %v189
  %v191 = vrot.slane %v186, %v190
  %193 = vmatprep.subr.mxu0 0.0
  %194 = vmatpush1.msra.mxu0 %v185
  %195 = vmatprep.subr.mxu0 0.0
  %196 = vmatpush1.msra.mxu0 %v184
  %197 = vmatprep.subr.mxu0 0.0
  %198 = vmatpush1.msra.mxu0 %v183
  %199 = vmatprep.subr.mxu0 0.0
  %200 = vmatpush1.msra.mxu0 %v182
  %201 = vmatprep.subr.mxu0 0.0
  %202 = vmatpush1.msra.mxu0 %v181
  %203 = vmatprep.subr.mxu0 0.0
  %204 = vmatpush1.msra.mxu0 %v180
  %205 = vmatprep.subr.mxu0 0.0
  %206 = vmatpush1.msra.mxu0 %v179
  %207 = vmatprep.subr.mxu0 0.0
  %208 = vmatpush1.msra.mxu0 %v178
  %209 = vmatprep.subr.mxu0 0.0
  %210 = vmatpush1.msra.mxu0 %v177
  %211 = vmatprep.subr.mxu0 0.0
  %212 = vmatpush1.msra.mxu0 %v176
  %213 = vmatprep.subr.mxu0 0.0
  %214 = vmatpush1.msra.mxu0 %v175
  %215 = vmatprep.subr.mxu0 0.0
  %216 = vmatpush1.msra.mxu0 %v174
  %217 = vmatprep.subr.mxu0 0.0
  %218 = vmatpush1.msra.mxu0 %v173
  %219 = vmatprep.subr.mxu0 0.0
  %220 = vmatpush1.msra.mxu0 %v172
  %221 = vmatprep.subr.mxu0 0.0
  %222 = vmatpush1.msra.mxu0 %v171
  %223 = vmatprep.subr.mxu0 0.0
  %224 = vmatpush1.msra.mxu0 %v170
  %225 = vmatprep.subr.mxu0 0.0
  %226 = vmatpush2.msra.mxu0 0.0
  %227 = vmatprep.subr.mxu0 0.0
  %228 = vmatpush2.msra.mxu0 0.0
  %229 = vmatprep.subr.mxu0 0.0
  %230 = vmatpush2.msra.mxu0 0.0
  %231 = vmatprep.subr.mxu0 0.0
  %232 = vmatpush2.msra.mxu0 0.0
  %233 = vmatprep.subr.mxu0 0.0
  %234 = vmatpush2.msra.mxu0 0.0
  %235 = vmatprep.subr.mxu0 0.0
  %236 = vmatpush2.msra.mxu0 0.0
  %237 = vmatprep.subr.mxu0 0.0
  %238 = vmatpush2.msra.mxu0 0.0
  %239 = vmatprep.subr.mxu0 0.0
  %240 = vmatpush2.msra.mxu0 0.0
  %241 = vmatprep.subr.mxu0 0.0
  %242 = vmatpush2.msra.mxu0 0.0
  %243 = vmatprep.subr.mxu0 0.0
  %244 = vmatpush2.msra.mxu0 0.0
  %245 = vmatprep.subr.mxu0 0.0
  %246 = vmatpush2.msra.mxu0 0.0
  %247 = vmatprep.subr.mxu0 0.0
  %248 = vmatpush2.msra.mxu0 0.0
  %249 = vmatprep.subr.mxu0 0.0
  %250 = vmatpush2.msra.mxu0 0.0
  %251 = vmatprep.subr.mxu0 0.0
  %252 = vmatpush2.msra.mxu0 0.0
  %253 = vmatprep.subr.mxu0 0.0
  %254 = vmatpush2.msra.mxu0 0.0
  %255 = vmatprep.subr.mxu0 0.0
  %256 = vmatpush2.msra.mxu0 0.0
  %257 = vmatprep.mubr.f32.mxu0 0.0
  %258 = vmatmul.mubr.f32.gmra.mxu0 %v162
  %v259 = vpop.f32.mrf.mxu0
  %v260 = vadd.f32 %v191, %v259
  %v261 = vpop.f32.mrf.mxu0
  %262 = vmatprep.mubr.f32.mxu0 0.0
  %263 = vmatmul.mubr.f32.gmra.mxu0 %v163
  %v264 = vpop.f32.mrf.mxu0
  %v265 = vadd.f32 %v191, %v264
  %v266 = vpop.f32.mrf.mxu0
  %267 = vmatprep.mubr.f32.mxu0 0.0
  %268 = vmatmul.mubr.f32.gmra.mxu0 %v164
  %v269 = vpop.f32.mrf.mxu0
  %v270 = vadd.f32 %v191, %v269
  %v271 = vpop.f32.mrf.mxu0
  %272 = vmatprep.mubr.f32.mxu0 0.0
  %273 = vmatmul.mubr.f32.gmra.mxu0 %v165
  %v274 = vpop.f32.mrf.mxu0
  %v275 = vadd.f32 %v191, %v274
  %v276 = vpop.f32.mrf.mxu0
  %277 = vmatprep.mubr.f32.mxu0 0.0
  %278 = vmatmul.mubr.f32.gmra.mxu0 %v166
  %v279 = vpop.f32.mrf.mxu0
  %v280 = vadd.f32 %v191, %v279
  %v281 = vpop.f32.mrf.mxu0
  %282 = vmatprep.mubr.f32.mxu0 0.0
  %283 = vmatmul.mubr.f32.gmra.mxu0 %v167
  %v284 = vpop.f32.mrf.mxu0
  %v285 = vadd.f32 %v191, %v284
  %v286 = vpop.f32.mrf.mxu0
  %287 = vmatprep.mubr.f32.mxu0 0.0
  %288 = vmatmul.mubr.f32.gmra.mxu0 %v168
  %v289 = vpop.f32.mrf.mxu0
  %v290 = vadd.f32 %v191, %v289
  %v291 = vpop.f32.mrf.mxu0
  %292 = vmatprep.mubr.f32.mxu0 0.0
  %293 = vmatmul.mubr.f32.gmra.mxu0 %v169
  %v294 = vpop.f32.mrf.mxu0
  %v295 = vadd.f32 %v191, %v294
  %v296 = vpop.f32.mrf.mxu0
  %297 = vdwg.mxu0
  %v298 = vtanh.pop %v260
  %v299 = vtanh.pop %v265
  %v300 = vtanh.pop %v270
  %v301 = vtanh.pop %v275
  %v302 = vtanh.pop %v280
  %v303 = vtanh.pop %v285
  %v304 = vtanh.pop %v290
  %v305 = vtanh.pop %v295
  %v306 = vld [vmem:[%s5] sm:$0xff]
  %v307 = vld [vmem:[%s5 + $0x8] sm:$0xff]
  %v308 = vld [vmem:[%s5 + $0x10] sm:$0xff]
  %v309 = vld [vmem:[%s5 + $0x18] sm:$0xff]
  %v310 = vld [vmem:[%s5 + $0x20] sm:$0xff]
  %v311 = vld [vmem:[%s5 + $0x28] sm:$0xff]
  %v312 = vld [vmem:[%s5 + $0x30] sm:$0xff]
  %v313 = vld [vmem:[%s5 + $0x38] sm:$0xff]
  %v314 = vld [vmem:[%s5 + $0x40] sm:$0xff]
  %v315 = vld [vmem:[%s5 + $0x48] sm:$0xff]
  %v316 = vld [vmem:[%s5 + $0x50] sm:$0xff]
  %v317 = vld [vmem:[%s5 + $0x58] sm:$0xff]
  %v318 = vld [vmem:[%s5 + $0x60] sm:$0xff]
  %v319 = vld [vmem:[%s5 + $0x68] sm:$0xff]
  %v320 = vld [vmem:[%s5 + $0x70] sm:$0xff]
  %v321 = vld [vmem:[%s5 + $0x78] sm:$0xff]
  %v322 = vld [vmem:[%s6] sm:$0x1]
  %v324 = vlaneseq
  %v325 = vshrl.u32 %v324, 7
  %v326 = vsub.s32 0, %v325
  %v327 = vrot.slane %v322, %v326
  %329 = vmatprep.subr.mxu0 0.0
  %330 = vmatpush1.msra.mxu0 %v321
  %331 = vmatprep.subr.mxu0 0.0
  %332 = vmatpush1.msra.mxu0 %v320
  %333 = vmatprep.subr.mxu0 0.0
  %334 = vmatpush1.msra.mxu0 %v319
  %335 = vmatprep.subr.mxu0 0.0
  %336 = vmatpush1.msra.mxu0 %v318
  %337 = vmatprep.subr.mxu0 0.0
  %338 = vmatpush1.msra.mxu0 %v317
  %339 = vmatprep.subr.mxu0 0.0
  %340 = vmatpush1.msra.mxu0 %v316
  %341 = vmatprep.subr.mxu0 0.0
  %342 = vmatpush1.msra.mxu0 %v315
  %343 = vmatprep.subr.mxu0 0.0
  %344 = vmatpush1.msra.mxu0 %v314
  %345 = vmatprep.subr.mxu0 0.0
  %346 = vmatpush1.msra.mxu0 %v313
  %347 = vmatprep.subr.mxu0 0.0
  %348 = vmatpush1.msra.mxu0 %v312
  %349 = vmatprep.subr.mxu0 0.0
  %350 = vmatpush1.msra.mxu0 %v311
  %351 = vmatprep.subr.mxu0 0.0
  %352 = vmatpush1.msra.mxu0 %v310
  %353 = vmatprep.subr.mxu0 0.0
  %354 = vmatpush1.msra.mxu0 %v309
  %355 = vmatprep.subr.mxu0 0.0
  %356 = vmatpush1.msra.mxu0 %v308
  %357 = vmatprep.subr.mxu0 0.0
  %358 = vmatpush1.msra.mxu0 %v307
  %359 = vmatprep.subr.mxu0 0.0
  %360 = vmatpush1.msra.mxu0 %v306
  %361 = vmatprep.subr.mxu0 0.0
  %362 = vmatpush2.msra.mxu0 0.0
  %363 = vmatprep.subr.mxu0 0.0
  %364 = vmatpush2.msra.mxu0 0.0
  %365 = vmatprep.subr.mxu0 0.0
  %366 = vmatpush2.msra.mxu0 0.0
  %367 = vmatprep.subr.mxu0 0.0
  %368 = vmatpush2.msra.mxu0 0.0
  %369 = vmatprep.subr.mxu0 0.0
  %370 = vmatpush2.msra.mxu0 0.0
  %371 = vmatprep.subr.mxu0 0.0
  %372 = vmatpush2.msra.mxu0 0.0
  %373 = vmatprep.subr.mxu0 0.0
  %374 = vmatpush2.msra.mxu0 0.0
  %375 = vmatprep.subr.mxu0 0.0
  %376 = vmatpush2.msra.mxu0 0.0
  %377 = vmatprep.subr.mxu0 0.0
  %378 = vmatpush2.msra.mxu0 0.0
  %379 = vmatprep.subr.mxu0 0.0
  %380 = vmatpush2.msra.mxu0 0.0
  %381 = vmatprep.subr.mxu0 0.0
  %382 = vmatpush2.msra.mxu0 0.0
  %383 = vmatprep.subr.mxu0 0.0
  %384 = vmatpush2.msra.mxu0 0.0
  %385 = vmatprep.subr.mxu0 0.0
  %386 = vmatpush2.msra.mxu0 0.0
  %387 = vmatprep.subr.mxu0 0.0
  %388 = vmatpush2.msra.mxu0 0.0
  %389 = vmatprep.subr.mxu0 0.0
  %390 = vmatpush2.msra.mxu0 0.0
  %391 = vmatprep.subr.mxu0 0.0
  %392 = vmatpush2.msra.mxu0 0.0
  %393 = vmatprep.mubr.f32.mxu0 0.0
  %394 = vmatmul.mubr.f32.gmra.mxu0 %v298
  %v395 = vpop.f32.mrf.mxu0
  %v396 = vadd.f32 %v327, %v395
  %v397 = vpop.f32.mrf.mxu0
  %398 = vmatprep.mubr.f32.mxu0 0.0
  %399 = vmatmul.mubr.f32.gmra.mxu0 %v299
  %v400 = vpop.f32.mrf.mxu0
  %v401 = vadd.f32 %v327, %v400
  %v402 = vpop.f32.mrf.mxu0
  %403 = vmatprep.mubr.f32.mxu0 0.0
  %404 = vmatmul.mubr.f32.gmra.mxu0 %v300
  %v405 = vpop.f32.mrf.mxu0
  %v406 = vadd.f32 %v327, %v405
  %v407 = vpop.f32.mrf.mxu0
  %408 = vmatprep.mubr.f32.mxu0 0.0
  %409 = vmatmul.mubr.f32.gmra.mxu0 %v301
  %v410 = vpop.f32.mrf.mxu0
  %v411 = vadd.f32 %v327, %v410
  %v412 = vpop.f32.mrf.mxu0
  %413 = vmatprep.mubr.f32.mxu0 0.0
  %414 = vmatmul.mubr.f32.gmra.mxu0 %v302
  %v415 = vpop.f32.mrf.mxu0
  %v416 = vadd.f32 %v327, %v415
  %v417 = vpop.f32.mrf.mxu0
  %418 = vmatprep.mubr.f32.mxu0 0.0
  %419 = vmatmul.mubr.f32.gmra.mxu0 %v303
  %v420 = vpop.f32.mrf.mxu0
  %v421 = vadd.f32 %v327, %v420
  %v422 = vpop.f32.mrf.mxu0
  %423 = vmatprep.mubr.f32.mxu0 0.0
  %424 = vmatmul.mubr.f32.gmra.mxu0 %v304
  %v425 = vpop.f32.mrf.mxu0
  %v426 = vadd.f32 %v327, %v425
  %v427 = vpop.f32.mrf.mxu0
  %428 = vmatprep.mubr.f32.mxu0 0.0
  %429 = vmatmul.mubr.f32.gmra.mxu0 %v305
  %v430 = vpop.f32.mrf.mxu0
  %v431 = vadd.f32 %v327, %v430
  %v432 = vpop.f32.mrf.mxu0
  %433 = vdwg.mxu0
  %434 = vst [vmem:[%s7] sm:$0xff] %v396
  %435 = vst [vmem:[%s7 + $0x8] sm:$0xff] %v401
  %436 = vst [vmem:[%s7 + $0x10] sm:$0xff] %v406
  %437 = vst [vmem:[%s7 + $0x18] sm:$0xff] %v411
  %438 = vst [vmem:[%s7 + $0x20] sm:$0xff] %v416
  %439 = vst [vmem:[%s7 + $0x28] sm:$0xff] %v421
  %440 = vst [vmem:[%s7 + $0x30] sm:$0xff] %v426
  %441 = vst [vmem:[%s7 + $0x38] sm:$0xff] %v431
  // Predicated region
  $region30: #{np_decoder_forward.1} parent=0 // pred_check
    _
  $region31: #{np_decoder_forward.1} parent=0 // pred_check_branch
    %443 = sbr.rel (0) target = $region33
  $region32: #{np_decoder_forward.1} parent=0 // pred_region
    _
  $region33: #{np_decoder_forward.1} parent=0 // pred_fallthru
    _
  // Predicated region
  $region34: #{np_decoder_forward.1} parent=0 // pred_check
    _
  $region35: #{np_decoder_forward.1} parent=0 // pred_check_branch
    %445 = sbr.rel (0) target = $region37
  $region36: #{np_decoder_forward.1} parent=0 // pred_region
    _
  $region37: #{np_decoder_forward.1} parent=0 // pred_fallthru
    _

</llo_original>
